<compile_context>
chip_gen: v7x
topology: tpu7x:2x2x1
jax: 0.10.0
libtpu: 0.0.40
codegen_flags: <defaults>
</compile_context>

<pallas_src>
import jax
import jax.numpy as jnp
from jax.experimental import pallas as pl
from jax.experimental.pallas import tpu as pltpu


def _patch_embed_kernel(a_ref, w_ref, b_ref, o_ref):
    # a_ref: (TM, K_pad) bf16 patch tile; w_ref: (K_pad, N_pad) bf16 resident;
    # b_ref: (1, N_pad) f32 resident; o_ref: (TM, N_pad) out_dtype.
    acc = jnp.dot(a_ref[...], w_ref[...], preferred_element_type=jnp.float32)
    o_ref[...] = (acc + b_ref[...]).astype(o_ref.dtype)


def _round_up(x, m):
    return ((x + m - 1) // m) * m


def _vmem_budget_bytes():
    # Generation-aware scoped-VMEM budget (leave ~25% headroom for the
    # compiler): ~96 MiB on v5e/v6e (128 MiB physical), ~48 MiB on v7x (64 MiB).
    try:
        cap = int(pltpu.get_tpu_info().vmem_capacity_bytes)
    except Exception:
        cap = 64 * 1024 * 1024  # conservative (v7x-sized) fallback
    return (cap * 3) // 4


def _pick_tiling(M, tm, per_row_bytes, row_budget_bytes):
    """Choose (TM, num_tiles) so TM*num_tiles >= M, padding waste is small,
    the grid is even (>1) for v7x's 2 TensorCores, and the tile fits VMEM."""
    num_tiles = max(1, pl.cdiv(M, tm))
    while True:
        if num_tiles > 1 and num_tiles % 2:
            num_tiles += 1  # even grid -> balances v7x's 2 TCs
        TM = _round_up(pl.cdiv(M, num_tiles), 16)  # bf16 sublane packing
        if TM * per_row_bytes <= row_budget_bytes or TM <= 16:
            return TM, num_tiles
        num_tiles *= 2  # shrink the tile until it fits the VMEM budget


def patch_embeddings(x, weight, bias, patch_size, stride, *, tm=2048,
                     out_dtype=None, tokens_out=False):
    """Equivalent of nn.Conv2d(C, hidden, kernel_size=P, stride=P) for the
    non-overlapping case (patch_size == stride).

    x:      (B, C, H, W)        NCHW (PyTorch convention)
    weight: (hidden, C, P, P)   conv weight (OIHW)
    bias:   (hidden,)
    returns (B, hidden, H//P, W//P), or (B, nH*nW, hidden) if tokens_out.
    """
    assert patch_size == stride, "kernel assumes non-overlapping patches"
    B, C, H, W = x.shape
    hidden = weight.shape[0]
    P = patch_size
    nH, nW = H // P, W // P
    out_dtype = x.dtype if out_dtype is None else out_dtype

    # --- glue: im2col.  Cast to bf16 FIRST so the cast fuses into the
    # transpose copy under jit (single bf16 A-matrix materialization).
    xb = x.astype(jnp.bfloat16)
    patches = xb.reshape(B, C, nH, P, nW, P)
    patches = jnp.transpose(patches, (0, 2, 4, 1, 3, 5))   # (B,nH,nW,C,P,P)
    a = patches.reshape(B * nH * nW, C * P * P)            # (M, K) bf16

    # conv weight (hidden, C, P, P) -> (K, hidden); matches a's flatten order.
    w = weight.reshape(hidden, C * P * P).T.astype(jnp.bfloat16)
    b = bias.reshape(1, hidden).astype(jnp.float32)

    M, K = a.shape
    N = hidden

    # Lane-dense padding: both K and N up to multiples of 128 (zero pad is a
    # mathematical no-op for the matmul / bias columns are sliced off below).
    K_pad = _round_up(K, 128)
    N_pad = _round_up(N, 128)

    # --- tiling / VMEM budgeting ----------------------------------------
    out_itemsize = jnp.dtype(out_dtype).itemsize
    vmem_budget = _vmem_budget_bytes()
    resident_bytes = 2 * (K_pad * N_pad * 2) + 2 * (N_pad * 4)  # W + bias (db)
    per_row_bytes = 2 * (K_pad * 2) + 2 * (N_pad * out_itemsize)  # A + out (db)
    row_budget = max(vmem_budget - resident_bytes, 1 << 20)
    TM, num_tiles = _pick_tiling(M, tm, per_row_bytes, row_budget)
    M_pad = TM * num_tiles

    footprint = TM * per_row_bytes + resident_bytes
    vmem_limit = min(vmem_budget, max(32 * 1024 * 1024, footprint + (4 << 20)))

    # --- padding ----------------------------------------------------------
    if (M_pad, K_pad) != (M, K):
        a = jnp.pad(a, ((0, M_pad - M), (0, K_pad - K)))
    if (K_pad, N_pad) != (K, N):
        w = jnp.pad(w, ((0, K_pad - K), (0, N_pad - N)))
        b = jnp.pad(b, ((0, 0), (0, N_pad - N)))

    cost = pl.CostEstimate(
        flops=2 * M_pad * K_pad * N_pad,
        transcendentals=0,
        bytes_accessed=(M_pad * K_pad * 2) + (K_pad * N_pad * 2)
        + (N_pad * 4) + (M_pad * N_pad * out_itemsize),
    )

    out = pl.pallas_call(
        _patch_embed_kernel,
        out_shape=jax.ShapeDtypeStruct((M_pad, N_pad), out_dtype),
        grid_spec=pltpu.PrefetchScalarGridSpec(
            num_scalar_prefetch=0,
            grid=(num_tiles,),
            in_specs=[
                pl.BlockSpec((TM, K_pad), lambda i: (i, 0)),     # A, pipelined
                pl.BlockSpec((K_pad, N_pad), lambda i: (0, 0)),  # W, resident
                pl.BlockSpec((1, N_pad), lambda i: (0, 0)),      # bias, resident
            ],
            out_specs=pl.BlockSpec((TM, N_pad), lambda i: (i, 0)),
        ),
        compiler_params=pltpu.CompilerParams(
            dimension_semantics=("parallel",),
            vmem_limit_bytes=vmem_limit,
        ),
        cost_estimate=cost,
    )(a, w, b)

    out = out[:M, :N]
    if tokens_out:
        # ViT-encoder layout: skip the lane-changing NCHW transpose entirely.
        return out.reshape(B, nH * nW, hidden)
    out = out.reshape(B, nH, nW, hidden)
    return jnp.transpose(out, (0, 3, 1, 2))  # (B, hidden, nH, nW)


if __name__ == "__main__":
    # config: image_channels=4, hidden_size=32, patch_size=encoder_stride=8
    B, C, H, W = 2, 4, 16, 16
    P = 8
    hidden = 32

    key = jax.random.PRNGKey(0)
    kx, kw, kb = jax.random.split(key, 3)

    x = jax.random.normal(kx, (B, C, H, W), dtype=jnp.float32)
    weight = jax.random.normal(kw, (hidden, C, P, P), dtype=jnp.float32) * 0.02
    bias = jax.random.normal(kb, (hidden,), dtype=jnp.float32) * 0.02

    # Run under jit so pad / cast / reshape / transpose glue fuses.
    fwd = jax.jit(lambda xx, ww, bb: patch_embeddings(xx, ww, bb,
                                                      patch_size=P, stride=P))
    y = jax.block_until_ready(fwd(x, weight, bias))

    # Reference check against XLA's conv (NCHW, OIHW); bf16 matmul inputs with
    # f32 accumulation -> relaxed tolerance.
    ref = jax.lax.conv_general_dilated(
        x, weight, window_strides=(P, P), padding="VALID",
        dimension_numbers=("NCHW", "OIHW", "NCHW"),
    ) + bias.reshape(1, hidden, 1, 1)
    assert y.shape == (B, hidden, H // P, W // P)
    assert jnp.allclose(y, ref, atol=2e-2, rtol=2e-2)

    print("KERNEL_OK")
</pallas_src>

<mosaic_0001>
module attributes {stable_mosaic.version = 11 : i64} {
  func.func @_patch_embed_kernel(%arg0: i32, %arg1: memref<16x256xbf16, #tpu.memory_space<vmem>>, %arg2: memref<256x128xbf16, #tpu.memory_space<vmem>>, %arg3: memref<1x128xf32, #tpu.memory_space<vmem>>, %arg4: memref<16x128xf32, #tpu.memory_space<vmem>>) attributes {dimension_semantics = [#tpu.dimension_semantics<parallel>], iteration_bounds = array<i64: 1>, scalar_prefetch = 0 : i64, scratch_operands = 0 : i64, tpu.core_type = #tpu.core_type<tc>, window_params = [{transform_indices = @transform_0, window_bounds = array<i64: 16, 256>}, {pipeline_mode = #tpu.pipeline_mode<synchronous>, transform_indices = @transform_1, window_bounds = array<i64: 256, 128>}, {pipeline_mode = #tpu.pipeline_mode<synchronous>, transform_indices = @transform_2, window_bounds = array<i64: 1, 128>}, {transform_indices = @transform_3, window_bounds = array<i64: 16, 128>}]} {
    %c0 = arith.constant 0 : index
    %c0_0 = arith.constant 0 : index
    %0 = vector.load %arg1[%c0, %c0_0] : memref<16x256xbf16, #tpu.memory_space<vmem>>, vector<16x256xbf16>
    %c0_1 = arith.constant 0 : index
    %c0_2 = arith.constant 0 : index
    %1 = vector.load %arg2[%c0_1, %c0_2] : memref<256x128xbf16, #tpu.memory_space<vmem>>, vector<256x128xbf16>
    %cst = arith.constant dense<0.000000e+00> : vector<16x128xf32>
    %2 = tpu.matmul %0, %1, %cst {dimension_numbers = #tpu.dot_dimension_numbers<[1], [0], [0], [1], [0, 0, 1, 1], [], []>} : vector<16x256xbf16>, vector<256x128xbf16>, vector<16x128xf32> -> vector<16x128xf32>
    %c0_3 = arith.constant 0 : index
    %c0_4 = arith.constant 0 : index
    %3 = vector.load %arg3[%c0_3, %c0_4] : memref<1x128xf32, #tpu.memory_space<vmem>>, vector<1x128xf32>
    %4 = vector.broadcast %3 : vector<1x128xf32> to vector<16x128xf32>
    %5 = arith.addf %2, %4 : vector<16x128xf32>
    %c0_5 = arith.constant 0 : index
    %c0_6 = arith.constant 0 : index
    %6 = vector.load %arg4[%c0_5, %c0_6] : memref<16x128xf32, #tpu.memory_space<vmem>>, vector<16x128xf32>
    tpu.vector_store %arg4[%c0_5, %c0_6], %5 {strides = array<i32>} : memref<16x128xf32, #tpu.memory_space<vmem>>, vector<16x128xf32>,
    return
  }
  func.func @transform_0(%arg0: i32) -> (i32, i32) {
    %c0_i32 = arith.constant 0 : i32
    %c0_i32_0 = arith.constant 0 : i32
    return %arg0, %c0_i32 : i32, i32
  }
  func.func @transform_1(%arg0: i32) -> (i32, i32) {
    %c0_i32 = arith.constant 0 : i32
    %c0_i32_0 = arith.constant 0 : i32
    %c0_i32_1 = arith.constant 0 : i32
    return %c0_i32, %c0_i32_0 : i32, i32
  }
  func.func @transform_2(%arg0: i32) -> (i32, i32) {
    %c0_i32 = arith.constant 0 : i32
    %c0_i32_0 = arith.constant 0 : i32
    %c0_i32_1 = arith.constant 0 : i32
    return %c0_i32, %c0_i32_0 : i32, i32
  }
  func.func @transform_3(%arg0: i32) -> (i32, i32) {
    %c0_i32 = arith.constant 0 : i32
    %c0_i32_0 = arith.constant 0 : i32
    return %arg0, %c0_i32 : i32, i32
  }
}

</mosaic_0001>

<llo_original>
// kernel: _lambda_.1
$region0: #{_lambda_.1}
  #allocation0 [shape = 'u32[]', space=smem, size = 0x4, offset = 0x4, fixed_abs, tag = 'smem constant byte address 0x4 - core index']
  #allocation1 [shape = 'u32[144,128]{1,0:T(1,128)}', space=vmem, size = 0x12000, scoped, tag = 'internal scratch']
  %s0 = inlined_call_operand.vmem [shape: bf16[16,256], index: 0, kind: input, shape index: {}]
  %s1 = inlined_call_operand.vmem [shape: bf16[256,128], index: 1, kind: input, shape index: {}]
  %s2 = inlined_call_operand.vmem [shape: f32[1,128], index: 2, kind: input, shape index: {}]
  %s3 = inlined_call_operand.vmem [shape: f32[16,128], index: 3, kind: output, shape index: {}]
  %s4 = sld [smem:[#allocation0]]
  $region22: #{_lambda_.1} parent=0
    _
  %s6 = ssub.s32 1, %s4
  %s7 = scalar_select 0, %s6, %s4
  // Predicated region
  $region2: #{_lambda_.1} parent=0 // pred_check
    _
  $region3: #{_lambda_.1} parent=0 // pred_check_branch
    %9 = sbr.rel (0) target = $region5
  $region4: #{_lambda_.1} parent=0 // pred_region
    _
  $region5: #{_lambda_.1} parent=0 // pred_fallthru
    _
  // Predicated region
  $region6: #{_lambda_.1} parent=0 // pred_check
    _
  $region7: #{_lambda_.1} parent=0 // pred_check_branch
    %11 = sbr.rel (0) target = $region9
  $region8: #{_lambda_.1} parent=0 // pred_region
    _
  $region9: #{_lambda_.1} parent=0 // pred_fallthru
    _
  // Predicated region
  $region10: #{_lambda_.1} parent=0 // pred_check
    _
  $region11: #{_lambda_.1} parent=0 // pred_check_branch
    %13 = sbr.rel (0) target = $region13
  $region12: #{_lambda_.1} parent=0 // pred_region
    _
  $region13: #{_lambda_.1} parent=0 // pred_fallthru
    _
  %v15 = vld [vmem:[%s0] sm:$0xff]
  %v16 = vld [vmem:[%s0 + $0x8] sm:$0xff]
  %v17 = vld [vmem:[%s1] sm:$0xf]
  %v18 = vld [vmem:[%s1 + $0x4] sm:$0xf]
  %v19 = vld [vmem:[%s1 + $0x8] sm:$0xf]
  %v20 = vld [vmem:[%s1 + $0xc] sm:$0xf]
  %v21 = vld [vmem:[%s1 + $0x10] sm:$0xf]
  %v22 = vld [vmem:[%s1 + $0x14] sm:$0xf]
  %v23 = vld [vmem:[%s1 + $0x18] sm:$0xf]
  %v24 = vld [vmem:[%s1 + $0x1c] sm:$0xf]
  %v25 = vld [vmem:[%s1 + $0x20] sm:$0xf]
  %v26 = vld [vmem:[%s1 + $0x24] sm:$0xf]
  %v27 = vld [vmem:[%s1 + $0x28] sm:$0xf]
  %v28 = vld [vmem:[%s1 + $0x2c] sm:$0xf]
  %v29 = vld [vmem:[%s1 + $0x30] sm:$0xf]
  %v30 = vld [vmem:[%s1 + $0x34] sm:$0xf]
  %v31 = vld [vmem:[%s1 + $0x38] sm:$0xf]
  %v32 = vld [vmem:[%s1 + $0x3c] sm:$0xf]
  %v33 = vld [vmem:[%s1 + $0x40] sm:$0xf]
  %v34 = vld [vmem:[%s1 + $0x44] sm:$0xf]
  %v35 = vld [vmem:[%s1 + $0x48] sm:$0xf]
  %v36 = vld [vmem:[%s1 + $0x4c] sm:$0xf]
  %v37 = vld [vmem:[%s1 + $0x50] sm:$0xf]
  %v38 = vld [vmem:[%s1 + $0x54] sm:$0xf]
  %v39 = vld [vmem:[%s1 + $0x58] sm:$0xf]
  %v40 = vld [vmem:[%s1 + $0x5c] sm:$0xf]
  %v41 = vld [vmem:[%s1 + $0x60] sm:$0xf]
  %v42 = vld [vmem:[%s1 + $0x64] sm:$0xf]
  %v43 = vld [vmem:[%s1 + $0x68] sm:$0xf]
  %v44 = vld [vmem:[%s1 + $0x6c] sm:$0xf]
  %v45 = vld [vmem:[%s1 + $0x70] sm:$0xf]
  %v46 = vld [vmem:[%s1 + $0x74] sm:$0xf]
  %v47 = vld [vmem:[%s1 + $0x78] sm:$0xf]
  %v48 = vld [vmem:[%s1 + $0x7c] sm:$0xf]
  %v49 = vld [vmem:[%s2] sm:$0x1]
  %v51 = vlaneseq
  %v52 = vshrl.u32 %v51, 7
  %v53 = vsub.s32 0, %v52
  %v54 = vrot.slane %v49, %v53
  %v58 = vunpack.c.l.b16 %v15
  %v59 = vunpack.c.h.b16 %v15
  %v60 = vunpack.c.l.b16 %v16
  %v61 = vunpack.c.h.b16 %v16
  %v62 = vpack.c.b16 %v60, %v58
  %v63 = vpack.c.b16 %v61, %v59
  %v98 = vunpack.c.l.b16 %v17
  %v99 = vunpack.c.l.b16 %v18
  %v100 = vunpack.c.l.b16 %v19
  %v101 = vunpack.c.l.b16 %v20
  %v102 = vunpack.c.l.b16 %v21
  %v103 = vunpack.c.l.b16 %v22
  %v104 = vunpack.c.l.b16 %v23
  %v105 = vunpack.c.l.b16 %v24
  %v106 = vunpack.c.l.b16 %v25
  %v107 = vunpack.c.l.b16 %v26
  %v108 = vunpack.c.l.b16 %v27
  %v109 = vunpack.c.l.b16 %v28
  %v110 = vunpack.c.l.b16 %v29
  %v111 = vunpack.c.l.b16 %v30
  %v112 = vunpack.c.l.b16 %v31
  %v113 = vunpack.c.l.b16 %v32
  %v114 = vunpack.c.l.b16 %v33
  %v115 = vunpack.c.l.b16 %v34
  %v116 = vunpack.c.l.b16 %v35
  %v117 = vunpack.c.l.b16 %v36
  %v118 = vunpack.c.l.b16 %v37
  %v119 = vunpack.c.l.b16 %v38
  %v120 = vunpack.c.l.b16 %v39
  %v121 = vunpack.c.l.b16 %v40
  %v122 = vunpack.c.l.b16 %v41
  %v123 = vunpack.c.l.b16 %v42
  %v124 = vunpack.c.l.b16 %v43
  %v125 = vunpack.c.l.b16 %v44
  %v126 = vunpack.c.l.b16 %v45
  %v127 = vunpack.c.l.b16 %v46
  %v128 = vunpack.c.l.b16 %v47
  %v129 = vunpack.c.l.b16 %v48
  %v130 = vpack.c.b16 %v99, %v98
  %v131 = vpack.c.b16 %v101, %v100
  %v132 = vpack.c.b16 %v103, %v102
  %v133 = vpack.c.b16 %v105, %v104
  %v134 = vpack.c.b16 %v107, %v106
  %v135 = vpack.c.b16 %v109, %v108
  %v136 = vpack.c.b16 %v111, %v110
  %v137 = vpack.c.b16 %v113, %v112
  %v138 = vpack.c.b16 %v115, %v114
  %v139 = vpack.c.b16 %v117, %v116
  %v140 = vpack.c.b16 %v119, %v118
  %v141 = vpack.c.b16 %v121, %v120
  %v142 = vpack.c.b16 %v123, %v122
  %v143 = vpack.c.b16 %v125, %v124
  %v144 = vpack.c.b16 %v127, %v126
  %v145 = vpack.c.b16 %v129, %v128
  %162 = vmatprep.subr.bf16.mxu0 0
  %163 = vmatpush1.bf16.msra.mxu0 %v130
  %164 = vmatprep.subr.bf16.mxu0 0
  %165 = vmatpush1.bf16.msra.mxu0 %v131
  %166 = vmatprep.subr.bf16.mxu0 0
  %167 = vmatpush1.bf16.msra.mxu0 %v132
  %168 = vmatprep.subr.bf16.mxu0 0
  %169 = vmatpush1.bf16.msra.mxu0 %v133
  %170 = vmatprep.subr.bf16.mxu0 0
  %171 = vmatpush1.bf16.msra.mxu0 %v134
  %172 = vmatprep.subr.bf16.mxu0 0
  %173 = vmatpush1.bf16.msra.mxu0 %v135
  %174 = vmatprep.subr.bf16.mxu0 0
  %175 = vmatpush1.bf16.msra.mxu0 %v136
  %176 = vmatprep.subr.bf16.mxu0 0
  %177 = vmatpush1.bf16.msra.mxu0 %v137
  %178 = vmatprep.subr.bf16.mxu0 0
  %179 = vmatpush1.bf16.msra.mxu0 %v138
  %180 = vmatprep.subr.bf16.mxu0 0
  %181 = vmatpush1.bf16.msra.mxu0 %v139
  %182 = vmatprep.subr.bf16.mxu0 0
  %183 = vmatpush1.bf16.msra.mxu0 %v140
  %184 = vmatprep.subr.bf16.mxu0 0
  %185 = vmatpush1.bf16.msra.mxu0 %v141
  %186 = vmatprep.subr.bf16.mxu0 0
  %187 = vmatpush1.bf16.msra.mxu0 %v142
  %188 = vmatprep.subr.bf16.mxu0 0
  %189 = vmatpush1.bf16.msra.mxu0 %v143
  %190 = vmatprep.subr.bf16.mxu0 0
  %191 = vmatpush1.bf16.msra.mxu0 %v144
  %192 = vmatprep.subr.bf16.mxu0 0
  %193 = vmatpush1.bf16.msra.mxu0 %v145
  %194 = vmatprep.mubr.bf16.mxu0 %v63
  %195 = vmatmul.mubr.bf16.gmra.mrb[0].mxu0 %v62
  %v196 = vpop.f32.mrb[0].mxu0
  %v197 = vadd.f32 %v54, %v196
  %v198 = vpop.f32.mrb[0].mxu0
  %v199 = vpop.f32.mrb[0].mxu0
  %v200 = vadd.f32 %v54, %v199
  %v201 = vpop.f32.mrb[0].mxu0
  %202 = vdwg.mxu0
  %203 = vst [vmem:[%s3] sm:$0xff] %v197
  %204 = vst [vmem:[%s3 + $0x8] sm:$0xff] %v200
  // Predicated region
  $region14: #{_lambda_.1} parent=0 // pred_check
    _
  $region15: #{_lambda_.1} parent=0 // pred_check_branch
    %206 = sbr.rel (0) target = $region17
  $region16: #{_lambda_.1} parent=0 // pred_region
    _
  $region17: #{_lambda_.1} parent=0 // pred_fallthru
    _
  // Predicated region
  $region18: #{_lambda_.1} parent=0 // pred_check
    _
  $region19: #{_lambda_.1} parent=0 // pred_check_branch
    %208 = sbr.rel (0) target = $region21
  $region20: #{_lambda_.1} parent=0 // pred_region
    _
  $region21: #{_lambda_.1} parent=0 // pred_fallthru
    _

</llo_original>
